<compile_context>
chip_gen: v5e
topology: v5e:2x2
jax: 0.10.0
libtpu: 0.0.40
codegen_flags: <defaults>
</compile_context>

<pallas_src>
import math

import jax
import jax.numpy as jnp
from jax import lax
from jax.experimental import pallas as pl
from jax.experimental.pallas import tpu as pltpu


_NEG_FILL = float(-(1 << 32))


def _round_up(x, mult):
    return (x + mult - 1) // mult * mult


def _cdiv(a, b):
    return (a + b - 1) // b


def _adj_atten_kernel(main_ref, mask_ref, wq_ref, bq_ref, k_ref, other_ref,
                      o_ref):
    # Q projection; 1/sqrt(mid) already folded into wq/bq. bf16 MXU, f32 acc.
    q = jnp.dot(main_ref[...], wq_ref[...],
                preferred_element_type=jnp.float32) + bq_ref[...]   # [bn, mid_p]

    # Scores: contract the shared `mid` axis directly (no K transpose).
    s = lax.dot_general(q.astype(jnp.bfloat16), k_ref[...],
                        (((1,), (1,)), ((), ())),
                        preferred_element_type=jnp.float32)         # [bn, M_p]

    # masked_fill: mask is int8 (1 == masked), pad key columns pre-masked.
    s = jnp.where(mask_ref[...] != 0, jnp.float32(_NEG_FILL), s)

    # Numerically stable softmax along the key axis (f32 math).
    m = jnp.max(s, axis=-1, keepdims=True)
    e = jnp.exp(s - m)
    den = jnp.sum(e, axis=-1, keepdims=True)
    p = e * pl.reciprocal(den, approx=True)                         # EUP slot

    # diag(fix_feat) already folded into `other` in the wrapper.
    o_ref[...] = jnp.dot(p.astype(jnp.bfloat16), other_ref[...],
                         preferred_element_type=jnp.float32).astype(o_ref.dtype)


def prepare_adj_atten_params(wq, bq, wk, bk):
    """One-time parameter prep (hoisted out of the per-call hot path).

    wq: [mid, Qdim], bq: [mid], wk: [mid, Kdim], bk: [mid]   (PyTorch layout)
    Returns pre-transposed, zero-padded (128-lane-aligned) Q-projection params
    with 1/sqrt(mid) folded in, plus f32 K-projection params used by the
    wrapper-side (XLA) K computation.
    """
    mid, qdim = wq.shape
    mid_p = _round_up(mid, 128)
    qdim_p = _round_up(qdim, 128)
    inv = 1.0 / math.sqrt(mid)

    wq_t = jnp.pad((wq.astype(jnp.float32) * inv).T,
                   ((0, qdim_p - qdim), (0, mid_p - mid))).astype(jnp.bfloat16)
    bq_r = jnp.pad((bq.astype(jnp.float32) * inv).reshape(1, mid),
                   ((0, 0), (0, mid_p - mid)))                       # f32 [1, mid_p]
    wk_t = wk.astype(jnp.float32).T                                  # [Kdim, mid]
    bk_r = bk.astype(jnp.float32).reshape(1, mid)
    return dict(wq_t=wq_t, bq=bq_r, wk_t=wk_t, bk=bk_r,
                mid=mid, mid_pad=mid_p, qdim=qdim, qdim_pad=qdim_p)


def adj_atten_agger(main_feat, other_feat, fix_feat, mask, params, *,
                    block_n=256):
    """Fused AdjAttenAgger forward.

    main_feat : [N, Qdim],  other_feat : [M, Kdim],  fix_feat : [M]
    mask      : [N, M] (nonzero/True == masked) or None
    params    : output of prepare_adj_atten_params
    """
    wq_t, bq_r = params["wq_t"], params["bq"]
    wk_t, bk_r = params["wk_t"], params["bk"]
    mid, mid_p = params["mid"], params["mid_pad"]
    qdim, qdim_p = params["qdim"], params["qdim_pad"]

    n = main_feat.shape[0]
    m, kdim = other_feat.shape
    m_p = _round_up(m, 128)
    kdim_p = _round_up(kdim, 128)

    # --- N tiling: >=2 parallel grid steps when possible (v7x megacore); -----
    # --- 32-row alignment keeps the int8 mask block tile-native.          ----
    n_rows = _round_up(n, 8)
    if n_rows < 32:
        n_block = n_rows                      # single step, block == full array
    else:
        n_block = min(_round_up(block_n, 32),
                      _round_up(_cdiv(n_rows, 2), 32))
    n_pad = _round_up(n_rows, n_block)
    grid = (n_pad // n_block,)

    # --- wrapper-side (XLA) prep: K projection hoist, fix fold, padding ------
    f32 = jnp.float32
    main_p = jnp.pad(main_feat.astype(f32),
                     ((0, n_pad - n), (0, qdim_p - qdim))).astype(jnp.bfloat16)

    k_proj = other_feat.astype(f32) @ wk_t + bk_r                    # [M, mid], once
    k_proj = jnp.pad(k_proj, ((0, m_p - m), (0, mid_p - mid))).astype(jnp.bfloat16)

    other_scaled = fix_feat.astype(f32)[:, None] * other_feat.astype(f32)
    other_scaled = jnp.pad(other_scaled,
                           ((0, m_p - m), (0, kdim_p - kdim))).astype(jnp.bfloat16)

    if mask is None:
        mask_core = jnp.zeros((n, m), jnp.int8)
    else:
        mask_core = (mask != 0).astype(jnp.int8)
    # Pad keys / pad rows are marked masked (value 1).
    mask_p = jnp.pad(mask_core, ((0, n_pad - n), (0, m_p - m)), constant_values=1)

    # --- VMEM budget + cost hint ----------------------------------------------
    resident_b = (wq_t.size * 2 + bq_r.size * 4
                  + k_proj.size * 2 + other_scaled.size * 2)
    streamed_b = n_block * (qdim_p * 2 + m_p * 1 + kdim_p * 4)
    interm_b = 4 * n_block * m_p * 4          # live f32 [bn, M_p] temporaries
    need = resident_b + 2 * streamed_b + interm_b
    vmem_limit = min(max(32 << 20, int(1.5 * need) + (4 << 20)), 128 << 20)

    cost = pl.CostEstimate(
        flops=2 * n_pad * (qdim_p * mid_p + mid_p * m_p + m_p * kdim_p),
        transcendentals=n_pad * m_p,
        bytes_accessed=(main_p.size * 2 + mask_p.size + wq_t.size * 2
                        + k_proj.size * 2 + other_scaled.size * 2
                        + n_pad * kdim_p * 4),
    )

    resident = dict(pipeline_mode=pl.Buffered(1))   # constants: no double buffer

    out = pl.pallas_call(
        _adj_atten_kernel,
        out_shape=jax.ShapeDtypeStruct((n_pad, kdim_p), jnp.float32),
        grid=grid,
        in_specs=[
            pl.BlockSpec((n_block, qdim_p), lambda i: (i, 0)),            # main (streamed)
            pl.BlockSpec((n_block, m_p), lambda i: (i, 0)),               # mask int8 (streamed)
            pl.BlockSpec((qdim_p, mid_p), lambda i: (0, 0), **resident),  # wq (resident)
            pl.BlockSpec((1, mid_p), lambda i: (0, 0), **resident),       # bq (resident)
            pl.BlockSpec((m_p, mid_p), lambda i: (0, 0), **resident),     # K  (resident)
            pl.BlockSpec((m_p, kdim_p), lambda i: (0, 0), **resident),    # fix*other (resident)
        ],
        out_specs=pl.BlockSpec((n_block, kdim_p), lambda i: (i, 0)),
        compiler_params=pltpu.CompilerParams(
            dimension_semantics=("parallel",),
            vmem_limit_bytes=vmem_limit),
        cost_estimate=cost,
    )(main_p, mask_p, wq_t, bq_r, k_proj, other_scaled)

    return out[:n, :kdim]


def _reference(main_feat, other_feat, fix_feat, mask, wq, bq, wk, bk):
    mid = wq.shape[0]
    q = main_feat @ wq.T + bq
    k = other_feat @ wk.T + bk
    attn = (q @ k.T) / math.sqrt(mid)
    if mask is not None:
        attn = jnp.where(mask != 0, jnp.float32(_NEG_FILL), attn)
    attn = jax.nn.softmax(attn, axis=-1)
    scaled = jnp.diag(fix_feat) @ other_feat
    return attn @ scaled


if __name__ == "__main__":
    # Small, deterministic shapes consistent with the module's forward.
    N, M = 8, 16            # num query items / num key items
    Qdim, Kdim, mid = 32, 64, 32

    key = jax.random.PRNGKey(0)
    k1, k2, k3, k4, k5, k6, k7, k8 = jax.random.split(key, 8)

    main_feat = jax.random.normal(k1, (N, Qdim), dtype=jnp.float32)
    other_feat = jax.random.normal(k2, (M, Kdim), dtype=jnp.float32)
    fix_feat = jax.random.uniform(k3, (M,), dtype=jnp.float32)
    mask = jax.random.bernoulli(k4, 0.2, (N, M)).astype(jnp.int32)

    # PyTorch Linear-style uniform init.
    bound_q = 1.0 / math.sqrt(Qdim)
    bound_k = 1.0 / math.sqrt(Kdim)
    wq = jax.random.uniform(k5, (mid, Qdim), jnp.float32, -bound_q, bound_q)
    bq = jax.random.uniform(k6, (mid,), jnp.float32, -bound_q, bound_q)
    wk = jax.random.uniform(k7, (mid, Kdim), jnp.float32, -bound_k, bound_k)
    bk = jax.random.uniform(k8, (mid,), jnp.float32, -bound_k, bound_k)

    params = prepare_adj_atten_params(wq, bq, wk, bk)   # one-time prep
    out = adj_atten_agger(main_feat, other_feat, fix_feat, mask, params)
    out = jax.block_until_ready(out)

    ref = _reference(main_feat, other_feat, fix_feat, mask, wq, bq, wk, bk)
    assert out.shape == (N, Kdim)
    # Tolerance accounts for bf16 MXU operands + approx EUP reciprocal.
    assert jnp.allclose(out, ref, rtol=3e-2, atol=3e-2), \
        f"max abs diff {jnp.max(jnp.abs(out - ref))}"

    print("KERNEL_OK")
</pallas_src>

<mosaic_0001>
module attributes {stable_mosaic.version = 11 : i64} {
  func.func @_adj_atten_kernel(%arg0: i32, %arg1: memref<8x128xbf16, #tpu.memory_space<vmem>>, %arg2: memref<8x128xi8, #tpu.memory_space<vmem>>, %arg3: memref<128x128xbf16, #tpu.memory_space<vmem>>, %arg4: memref<1x128xf32, #tpu.memory_space<vmem>>, %arg5: memref<128x128xbf16, #tpu.memory_space<vmem>>, %arg6: memref<128x128xbf16, #tpu.memory_space<vmem>>, %arg7: memref<8x128xf32, #tpu.memory_space<vmem>>) attributes {dimension_semantics = [#tpu.dimension_semantics<parallel>], iteration_bounds = array<i64: 1>, scalar_prefetch = 0 : i64, scratch_operands = 0 : i64, tpu.core_type = #tpu.core_type<tc>, window_params = [{transform_indices = @transform_0, window_bounds = array<i64: 8, 128>}, {transform_indices = @transform_1, window_bounds = array<i64: 8, 128>}, {pipeline_mode = #tpu.pipeline_mode<synchronous>, transform_indices = @transform_2, window_bounds = array<i64: 128, 128>}, {pipeline_mode = #tpu.pipeline_mode<synchronous>, transform_indices = @transform_3, window_bounds = array<i64: 1, 128>}, {pipeline_mode = #tpu.pipeline_mode<synchronous>, transform_indices = @transform_4, window_bounds = array<i64: 128, 128>}, {pipeline_mode = #tpu.pipeline_mode<synchronous>, transform_indices = @transform_5, window_bounds = array<i64: 128, 128>}, {transform_indices = @transform_6, window_bounds = array<i64: 8, 128>}]} {
    %c0 = arith.constant 0 : index
    %c0_0 = arith.constant 0 : index
    %0 = vector.load %arg1[%c0, %c0_0] : memref<8x128xbf16, #tpu.memory_space<vmem>>, vector<8x128xbf16>
    %c0_1 = arith.constant 0 : index
    %c0_2 = arith.constant 0 : index
    %1 = vector.load %arg3[%c0_1, %c0_2] : memref<128x128xbf16, #tpu.memory_space<vmem>>, vector<128x128xbf16>
    %cst = arith.constant dense<0.000000e+00> : vector<8x128xf32>
    %2 = tpu.matmul %0, %1, %cst {dimension_numbers = #tpu.dot_dimension_numbers<[1], [0], [0], [1], [0, 0, 1, 1], [], []>} : vector<8x128xbf16>, vector<128x128xbf16>, vector<8x128xf32> -> vector<8x128xf32>
    %c0_3 = arith.constant 0 : index
    %c0_4 = arith.constant 0 : index
    %3 = vector.load %arg4[%c0_3, %c0_4] : memref<1x128xf32, #tpu.memory_space<vmem>>, vector<1x128xf32>
    %4 = vector.broadcast %3 : vector<1x128xf32> to vector<8x128xf32>
    %5 = arith.addf %2, %4 : vector<8x128xf32>
    %6 = arith.truncf %5 : vector<8x128xf32> to vector<8x128xbf16>
    %c0_5 = arith.constant 0 : index
    %c0_6 = arith.constant 0 : index
    %7 = vector.load %arg5[%c0_5, %c0_6] : memref<128x128xbf16, #tpu.memory_space<vmem>>, vector<128x128xbf16>
    %cst_7 = arith.constant dense<0.000000e+00> : vector<8x128xf32>
    %8 = tpu.matmul %6, %7, %cst_7 {dimension_numbers = #tpu.dot_dimension_numbers<[1], [1], [0], [0], [0, 0, 1, 0], [], []>} : vector<8x128xbf16>, vector<128x128xbf16>, vector<8x128xf32> -> vector<8x128xf32>
    %c0_8 = arith.constant 0 : index
    %c0_9 = arith.constant 0 : index
    %9 = vector.load %arg2[%c0_8, %c0_9] : memref<8x128xi8, #tpu.memory_space<vmem>>, vector<8x128xi8>
    %c0_i8 = arith.constant 0 : i8
    %10 = vector.broadcast %c0_i8 : i8 to vector<8x128xi8>
    %11 = arith.cmpi ne, %9, %10 : vector<8x128xi8>
    %cst_10 = arith.constant -4.2949673E+9 : f32
    %12 = vector.broadcast %cst_10 : f32 to vector<8x128xf32>
    %13 = arith.select %11, %12, %8 : vector<8x128xi1>, vector<8x128xf32>
    %cst_11 = arith.constant dense<0xFF800000> : vector<8xf32>
    %14 = vector.multi_reduction <maximumf>, %13, %cst_11 [1] : vector<8x128xf32> to vector<8xf32>
    %15 = vector.shape_cast %14 : vector<8xf32> to vector<8x1xf32>
    %16 = vector.broadcast %15 : vector<8x1xf32> to vector<8x128xf32>
    %17 = arith.subf %13, %16 : vector<8x128xf32>
    %18 = math.exp %17 : vector<8x128xf32>
    %cst_12 = arith.constant dense<0.000000e+00> : vector<8xf32>
    %19 = vector.multi_reduction <add>, %18, %cst_12 [1] : vector<8x128xf32> to vector<8xf32>
    %20 = vector.shape_cast %19 : vector<8xf32> to vector<8x1xf32>
    %21 = tpu.reciprocal %20 {approx = true} : vector<8x1xf32> -> vector<8x1xf32>
    %22 = vector.broadcast %21 : vector<8x1xf32> to vector<8x128xf32>
    %23 = arith.mulf %18, %22 : vector<8x128xf32>
    %24 = arith.truncf %23 : vector<8x128xf32> to vector<8x128xbf16>
    %c0_13 = arith.constant 0 : index
    %c0_14 = arith.constant 0 : index
    %25 = vector.load %arg6[%c0_13, %c0_14] : memref<128x128xbf16, #tpu.memory_space<vmem>>, vector<128x128xbf16>
    %cst_15 = arith.constant dense<0.000000e+00> : vector<8x128xf32>
    %26 = tpu.matmul %24, %25, %cst_15 {dimension_numbers = #tpu.dot_dimension_numbers<[1], [0], [0], [1], [0, 0, 1, 1], [], []>} : vector<8x128xbf16>, vector<128x128xbf16>, vector<8x128xf32> -> vector<8x128xf32>
    %c0_16 = arith.constant 0 : index
    %c0_17 = arith.constant 0 : index
    %27 = vector.load %arg7[%c0_16, %c0_17] : memref<8x128xf32, #tpu.memory_space<vmem>>, vector<8x128xf32>
    tpu.vector_store %arg7[%c0_16, %c0_17], %26 {strides = array<i32>} : memref<8x128xf32, #tpu.memory_space<vmem>>, vector<8x128xf32>,
    return
  }
  func.func @transform_0(%arg0: i32) -> (i32, i32) {
    %c0_i32 = arith.constant 0 : i32
    %c0_i32_0 = arith.constant 0 : i32
    return %arg0, %c0_i32 : i32, i32
  }
  func.func @transform_1(%arg0: i32) -> (i32, i32) {
    %c0_i32 = arith.constant 0 : i32
    %c0_i32_0 = arith.constant 0 : i32
    return %arg0, %c0_i32 : i32, i32
  }
  func.func @transform_2(%arg0: i32) -> (i32, i32) {
    %c0_i32 = arith.constant 0 : i32
    %c0_i32_0 = arith.constant 0 : i32
    %c0_i32_1 = arith.constant 0 : i32
    return %c0_i32, %c0_i32_0 : i32, i32
  }
  func.func @transform_3(%arg0: i32) -> (i32, i32) {
    %c0_i32 = arith.constant 0 : i32
    %c0_i32_0 = arith.constant 0 : i32
    %c0_i32_1 = arith.constant 0 : i32
    return %c0_i32, %c0_i32_0 : i32, i32
  }
  func.func @transform_4(%arg0: i32) -> (i32, i32) {
    %c0_i32 = arith.constant 0 : i32
    %c0_i32_0 = arith.constant 0 : i32
    %c0_i32_1 = arith.constant 0 : i32
    return %c0_i32, %c0_i32_0 : i32, i32
  }
  func.func @transform_5(%arg0: i32) -> (i32, i32) {
    %c0_i32 = arith.constant 0 : i32
    %c0_i32_0 = arith.constant 0 : i32
    %c0_i32_1 = arith.constant 0 : i32
    return %c0_i32, %c0_i32_0 : i32, i32
  }
  func.func @transform_6(%arg0: i32) -> (i32, i32) {
    %c0_i32 = arith.constant 0 : i32
    %c0_i32_0 = arith.constant 0 : i32
    return %arg0, %c0_i32 : i32, i32
  }
}

</mosaic_0001>

<llo_original>
// kernel: tpu_custom_call.1
$region0: #{tpu_custom_call.1}
  #allocation0 [shape = 'u32[]', space=smem, size = 0x4, offset = 0x4, fixed_abs, tag = 'smem constant byte address 0x4 - core index']
  #allocation1 [shape = 'u32[72,128]{1,0:T(1,128)}', space=vmem, size = 0x9000, scoped, tag = 'internal scratch']
  %s0 = inlined_call_operand.hbm [shape: bf16[8,128], index: 0, kind: input, shape index: {}]
  %s1 = inlined_call_operand.hbm [shape: s8[8,128], index: 1, kind: input, shape index: {}]
  %s2 = inlined_call_operand.hbm [shape: bf16[128,128], index: 2, kind: input, shape index: {}]
  %s3 = inlined_call_operand.vmem [shape: f32[1,128], index: 3, kind: input, shape index: {}]
  %s4 = inlined_call_operand.hbm [shape: bf16[128,128], index: 4, kind: input, shape index: {}]
  %s5 = inlined_call_operand.hbm [shape: bf16[128,128], index: 5, kind: input, shape index: {}]
  %s6 = inlined_call_operand.hbm [shape: f32[8,128], index: 6, kind: output, shape index: {}]
  %s7 = sld [smem:[#allocation0]]
  $region54: #{tpu_custom_call.1} parent=0
    _
  %s9 = ssub.s32 1, %s7
  %s10 = scalar_select 0, %s9, %s7
  $region1: #{tpu_custom_call.1} parent=0
    #allocation2 [shape = 'u8[2048]{0}', space=vmem, size = 0x800, scoped, tag = 'input window, operand 0, single buffered']
    #allocation3 [shape = 's32[1]{0}', space=sflag, size = 0x4, scoped, tag = 'scoped memory for tpu_custom_call.1']
    #allocation4 [shape = 's32[1]{0}', space=sflag, size = 0x4, scoped, tag = 'scoped memory for tpu_custom_call.1']
    #allocation5 [shape = 'u8[1024]{0}', space=vmem, size = 0x400, scoped, tag = 'input window, operand 1, single buffered']
    #allocation6 [shape = 's32[1]{0}', space=sflag, size = 0x4, scoped, tag = 'scoped memory for tpu_custom_call.1']
    #allocation7 [shape = 'u8[32768]{0}', space=vmem, size = 0x8000, scoped, tag = 'input window, operand 2, single buffered']
    #allocation8 [shape = 'u8[32768]{0}', space=vmem, size = 0x8000, scoped, tag = 'input window, operand 4, single buffered']
    #allocation9 [shape = 's32[1]{0}', space=sflag, size = 0x4, scoped, tag = 'scoped memory for tpu_custom_call.1']
    #allocation10 [shape = 'u8[32768]{0}', space=vmem, size = 0x8000, scoped, tag = 'input window, operand 5, single buffered']
    #allocation11 [shape = 'u8[4096]{0}', space=vmem, size = 0x1000, scoped, tag = 'output window, operand 0, single buffered']
    %11 = vsyncpa [#allocation3], 0
    %12 = vsyncpa [#allocation6], 0
    %13 = vsyncpa [#allocation9], 0
    %14 = vsyncpa [#allocation4], 0
    // Predicated region
    $region2: #{tpu_custom_call.1} parent=1 // pred_check
      _
    $region3: #{tpu_custom_call.1} parent=1 // pred_check_branch
      %16 = sbr.rel (0) target = $region5
    $region4: #{tpu_custom_call.1} parent=1 // pred_region
      %18 = vsyncadd [#allocation3], 0
      %s20 = sshll.u32 %s0, 4
      %s21 = int_to_ptr.hbm [resolvable:$true] %s20
      %s22 = sshll.u32 [#allocation2], 4
      %s23 = int_to_ptr.vmem [resolvable:$true] %s22
      %25 = dma.hbm_to_vmem [thread:$0]  %s21, 64, %s23, [#allocation3]
    $region5: #{tpu_custom_call.1} parent=1 // pred_fallthru
      _
    // Predicated region
    $region6: #{tpu_custom_call.1} parent=1 // pred_check
      _
    $region7: #{tpu_custom_call.1} parent=1 // pred_check_branch
      %27 = sbr.rel (0) target = $region9
    $region8: #{tpu_custom_call.1} parent=1 // pred_region
      %29 = vsyncadd [#allocation6], 0
      %s31 = sshll.u32 %s1, 4
      %s32 = int_to_ptr.hbm [resolvable:$true] %s31
      %s33 = sshll.u32 [#allocation5], 4
      %s34 = int_to_ptr.vmem [resolvable:$true] %s33
      %36 = dma.hbm_to_vmem [thread:$0]  %s32, 32, %s34, [#allocation6]
    $region9: #{tpu_custom_call.1} parent=1 // pred_fallthru
      _
    // Predicated region
    $region10: #{tpu_custom_call.1} parent=1 // pred_check
      _
    $region11: #{tpu_custom_call.1} parent=1 // pred_check_branch
      %38 = sbr.rel (0) target = $region13
    $region12: #{tpu_custom_call.1} parent=1 // pred_region
      %40 = vsyncadd [#allocation6], 0
      %s41 = sshll.u32 %s2, 4
      %s42 = int_to_ptr.hbm [resolvable:$true] %s41
      %s43 = sshll.u32 [#allocation7], 4
      %s44 = int_to_ptr.vmem [resolvable:$true] %s43
      %49 = dma.hbm_to_vmem [thread:$0]  %s42, 1024, %s44, [#allocation6], 64, 64, 4
    $region13: #{tpu_custom_call.1} parent=1 // pred_fallthru
      _
    // Predicated region
    $region14: #{tpu_custom_call.1} parent=1 // pred_check
      _
    $region15: #{tpu_custom_call.1} parent=1 // pred_check_branch
      %51 = sbr.rel (0) target = $region17
    $region16: #{tpu_custom_call.1} parent=1 // pred_region
      _
    $region17: #{tpu_custom_call.1} parent=1 // pred_fallthru
      _
    // Predicated region
    $region18: #{tpu_custom_call.1} parent=1 // pred_check
      _
    $region19: #{tpu_custom_call.1} parent=1 // pred_check_branch
      %53 = sbr.rel (0) target = $region21
    $region20: #{tpu_custom_call.1} parent=1 // pred_region
      %55 = vsyncadd [#allocation9], 0
      %s56 = sshll.u32 %s4, 4
      %s57 = int_to_ptr.hbm [resolvable:$true] %s56
      %s58 = sshll.u32 [#allocation8], 4
      %s59 = int_to_ptr.vmem [resolvable:$true] %s58
      %64 = dma.hbm_to_vmem [thread:$0]  %s57, 1024, %s59, [#allocation9], 64, 64, 4
    $region21: #{tpu_custom_call.1} parent=1 // pred_fallthru
      _
    // Predicated region
    $region22: #{tpu_custom_call.1} parent=1 // pred_check
      _
    $region23: #{tpu_custom_call.1} parent=1 // pred_check_branch
      %66 = sbr.rel (0) target = $region25
    $region24: #{tpu_custom_call.1} parent=1 // pred_region
      %68 = vsyncadd [#allocation9], 0
      %s69 = sshll.u32 %s5, 4
      %s70 = int_to_ptr.hbm [resolvable:$true] %s69
      %s71 = sshll.u32 [#allocation10], 4
      %s72 = int_to_ptr.vmem [resolvable:$true] %s71
      %77 = dma.hbm_to_vmem [thread:$0]  %s70, 1024, %s72, [#allocation9], 64, 64, 4
    $region25: #{tpu_custom_call.1} parent=1 // pred_fallthru
      _
    // Predicated region
    $region26: #{tpu_custom_call.1} parent=1 // pred_check
      _
    $region27: #{tpu_custom_call.1} parent=1 // pred_check_branch
      %79 = sbr.rel (0) target = $region29
    $region28: #{tpu_custom_call.1} parent=1 // pred_region
      %81 = dma.done [#allocation3], 64
    $region29: #{tpu_custom_call.1} parent=1 // pred_fallthru
      _
    // Predicated region
    $region30: #{tpu_custom_call.1} parent=1 // pred_check
      _
    $region31: #{tpu_custom_call.1} parent=1 // pred_check_branch
      %83 = sbr.rel (0) target = $region33
    $region32: #{tpu_custom_call.1} parent=1 // pred_region
      %85 = dma.done [#allocation6], 32
    $region33: #{tpu_custom_call.1} parent=1 // pred_fallthru
      _
    // Predicated region
    $region34: #{tpu_custom_call.1} parent=1 // pred_check
      _
    $region35: #{tpu_custom_call.1} parent=1 // pred_check_branch
      %87 = sbr.rel (0) target = $region37
    $region36: #{tpu_custom_call.1} parent=1 // pred_region
      %89 = dma.done [#allocation6], 1024
    $region37: #{tpu_custom_call.1} parent=1 // pred_fallthru
      _
    // Predicated region
    $region38: #{tpu_custom_call.1} parent=1 // pred_check
      _
    $region39: #{tpu_custom_call.1} parent=1 // pred_check_branch
      %91 = sbr.rel (0) target = $region41
    $region40: #{tpu_custom_call.1} parent=1 // pred_region
      %93 = dma.done [#allocation9], 1024
    $region41: #{tpu_custom_call.1} parent=1 // pred_fallthru
      _
    // Predicated region
    $region42: #{tpu_custom_call.1} parent=1 // pred_check
      _
    $region43: #{tpu_custom_call.1} parent=1 // pred_check_branch
      %95 = sbr.rel (0) target = $region45
    $region44: #{tpu_custom_call.1} parent=1 // pred_region
      %97 = dma.done [#allocation9], 1024
    $region45: #{tpu_custom_call.1} parent=1 // pred_fallthru
      _
    %v100 = vld [vmem:[#allocation2] sm:$0xf]
    %v101 = vld [vmem:[#allocation7] sm:$0xf]
    %v102 = vld [vmem:[#allocation7 + $0x4] sm:$0xf]
    %v103 = vld [vmem:[#allocation7 + $0x8] sm:$0xf]
    %v104 = vld [vmem:[#allocation7 + $0xc] sm:$0xf]
    %v105 = vld [vmem:[#allocation7 + $0x10] sm:$0xf]
    %v106 = vld [vmem:[#allocation7 + $0x14] sm:$0xf]
    %v107 = vld [vmem:[#allocation7 + $0x18] sm:$0xf]
    %v108 = vld [vmem:[#allocation7 + $0x1c] sm:$0xf]
    %v109 = vld [vmem:[#allocation7 + $0x20] sm:$0xf]
    %v110 = vld [vmem:[#allocation7 + $0x24] sm:$0xf]
    %v111 = vld [vmem:[#allocation7 + $0x28] sm:$0xf]
    %v112 = vld [vmem:[#allocation7 + $0x2c] sm:$0xf]
    %v113 = vld [vmem:[#allocation7 + $0x30] sm:$0xf]
    %v114 = vld [vmem:[#allocation7 + $0x34] sm:$0xf]
    %v115 = vld [vmem:[#allocation7 + $0x38] sm:$0xf]
    %v116 = vld [vmem:[#allocation7 + $0x3c] sm:$0xf]
    %v117 = vld [vmem:[%s3] sm:$0x1]
    %v119 = vperm.slane %v117, 0
    %v137 = vunpack.c.l.b16 %v101
    %v138 = vunpack.c.l.b16 %v102
    %v139 = vunpack.c.l.b16 %v103
    %v140 = vunpack.c.l.b16 %v104
    %v141 = vunpack.c.l.b16 %v105
    %v142 = vunpack.c.l.b16 %v106
    %v143 = vunpack.c.l.b16 %v107
    %v144 = vunpack.c.l.b16 %v108
    %v145 = vunpack.c.l.b16 %v109
    %v146 = vunpack.c.l.b16 %v110
    %v147 = vunpack.c.l.b16 %v111
    %v148 = vunpack.c.l.b16 %v112
    %v149 = vunpack.c.l.b16 %v113
    %v150 = vunpack.c.l.b16 %v114
    %v151 = vunpack.c.l.b16 %v115
    %v152 = vunpack.c.l.b16 %v116
    %v153 = vpack.c.b16 %v138, %v137
    %v154 = vpack.c.b16 %v140, %v139
    %v155 = vpack.c.b16 %v142, %v141
    %v156 = vpack.c.b16 %v144, %v143
    %v157 = vpack.c.b16 %v146, %v145
    %v158 = vpack.c.b16 %v148, %v147
    %v159 = vpack.c.b16 %v150, %v149
    %v160 = vpack.c.b16 %v152, %v151
    %169 = vmatpush.bf16.msra.mxu0 %v160
    %170 = vmatpush.bf16.msra.mxu0 %v159
    %171 = vmatpush.bf16.msra.mxu0 %v158
    %172 = vmatpush.bf16.msra.mxu0 %v157
    %173 = vmatpush.bf16.msra.mxu0 %v156
    %174 = vmatpush.bf16.msra.mxu0 %v155
    %175 = vmatpush.bf16.msra.mxu0 %v154
    %176 = vmatpush.bf16.msra.mxu0 %v153
    %177 = vmatmul.bf16.gmra.mxu0 %v100
    %v178 = vpop.f32.mrf.mxu0
    %v179 = vadd.f32 %v119, %v178
    %v180 = vpop.f32.mrf.mxu0
    %181 = vdwg.mxu0
    %v182 = vpack.c.bf16 %v179, %v179
    %v183 = vld [vmem:[#allocation8] sm:$0xf]
    %v184 = vld [vmem:[#allocation8 + $0x4] sm:$0xf]
    %v185 = vld [vmem:[#allocation8 + $0x8] sm:$0xf]
    %v186 = vld [vmem:[#allocation8 + $0xc] sm:$0xf]
    %v187 = vld [vmem:[#allocation8 + $0x10] sm:$0xf]
    %v188 = vld [vmem:[#allocation8 + $0x14] sm:$0xf]
    %v189 = vld [vmem:[#allocation8 + $0x18] sm:$0xf]
    %v190 = vld [vmem:[#allocation8 + $0x1c] sm:$0xf]
    %v191 = vld [vmem:[#allocation8 + $0x20] sm:$0xf]
    %v192 = vld [vmem:[#allocation8 + $0x24] sm:$0xf]
    %v193 = vld [vmem:[#allocation8 + $0x28] sm:$0xf]
    %v194 = vld [vmem:[#allocation8 + $0x2c] sm:$0xf]
    %v195 = vld [vmem:[#allocation8 + $0x30] sm:$0xf]
    %v196 = vld [vmem:[#allocation8 + $0x34] sm:$0xf]
    %v197 = vld [vmem:[#allocation8 + $0x38] sm:$0xf]
    %v198 = vld [vmem:[#allocation8 + $0x3c] sm:$0xf]
    %v215 = vunpack.c.l.b16 %v183
    %v216 = vunpack.c.l.b16 %v184
    %v217 = vunpack.c.l.b16 %v185
    %v218 = vunpack.c.l.b16 %v186
    %v219 = vunpack.c.l.b16 %v187
    %v220 = vunpack.c.l.b16 %v188
    %v221 = vunpack.c.l.b16 %v189
    %v222 = vunpack.c.l.b16 %v190
    %v223 = vunpack.c.l.b16 %v191
    %v224 = vunpack.c.l.b16 %v192
    %v225 = vunpack.c.l.b16 %v193
    %v226 = vunpack.c.l.b16 %v194
    %v227 = vunpack.c.l.b16 %v195
    %v228 = vunpack.c.l.b16 %v196
    %v229 = vunpack.c.l.b16 %v197
    %v230 = vunpack.c.l.b16 %v198
    %v231 = vpack.c.b16 %v216, %v215
    %v232 = vpack.c.b16 %v218, %v217
    %v233 = vpack.c.b16 %v220, %v219
    %v234 = vpack.c.b16 %v222, %v221
    %v235 = vpack.c.b16 %v224, %v223
    %v236 = vpack.c.b16 %v226, %v225
    %v237 = vpack.c.b16 %v228, %v227
    %v238 = vpack.c.b16 %v230, %v229
    %247 = vmatpush.bf16.xpose.msra.mxu0 %v238
    %248 = vmatpush.bf16.xpose.msra.mxu0 %v237
    %249 = vmatpush.bf16.xpose.msra.mxu0 %v236
    %250 = vmatpush.bf16.xpose.msra.mxu0 %v235
    %251 = vmatpush.bf16.xpose.msra.mxu0 %v234
    %252 = vmatpush.bf16.xpose.msra.mxu0 %v233
    %253 = vmatpush.bf16.xpose.msra.mxu0 %v232
    %254 = vmatpush.bf16.xpose.msra.mxu0 %v231
    %255 = vmatmul.bf16.gmra.mxu0 %v182
    %v256 = vpop.f32.mrf.mxu0
    %v257 = vadd.f32 0.0, %v256
    %v258 = vpop.f32.mrf.mxu0
    %259 = vdwg.mxu0
    %v260 = vld [vmem:[#allocation5] sm:$0x3]
    %vm261 = vnez %v260
    %v262 = vsel %vm261, 16843009, 0
    %v263 = vunpack.c.0.s8 %v262
    %vm264 = vcmp.ne.s32.totalorder %v263, 0
    %v265 = vsel %vm264, -4.2949673e+09, %v257
    %266 = vmax.xlane.f32.xlu0 %v265
    %v267 = vpop.xlane.xlu0 %266
    %v268 = vsub.f32 %v265, %v267
    %v269 = vmul.f32 %v268, 1.442695
    %v270 = vpow.pop %v269
    %271 = vadd.xlane.f32.xlu0 %v270
    %v272 = vpop.xlane.xlu0 %271
    %v273 = vrcp.pop %v272
    %v274 = vmul.f32 %v270, %v273
    %v275 = vpack.c.bf16 %v274, %v274
    %v276 = vld [vmem:[#allocation10] sm:$0xf]
    %v277 = vld [vmem:[#allocation10 + $0x4] sm:$0xf]
    %v278 = vld [vmem:[#allocation10 + $0x8] sm:$0xf]
    %v279 = vld [vmem:[#allocation10 + $0xc] sm:$0xf]
    %v280 = vld [vmem:[#allocation10 + $0x10] sm:$0xf]
    %v281 = vld [vmem:[#allocation10 + $0x14] sm:$0xf]
    %v282 = vld [vmem:[#allocation10 + $0x18] sm:$0xf]
    %v283 = vld [vmem:[#allocation10 + $0x1c] sm:$0xf]
    %v284 = vld [vmem:[#allocation10 + $0x20] sm:$0xf]
    %v285 = vld [vmem:[#allocation10 + $0x24] sm:$0xf]
    %v286 = vld [vmem:[#allocation10 + $0x28] sm:$0xf]
    %v287 = vld [vmem:[#allocation10 + $0x2c] sm:$0xf]
    %v288 = vld [vmem:[#allocation10 + $0x30] sm:$0xf]
    %v289 = vld [vmem:[#allocation10 + $0x34] sm:$0xf]
    %v290 = vld [vmem:[#allocation10 + $0x38] sm:$0xf]
    %v291 = vld [vmem:[#allocation10 + $0x3c] sm:$0xf]
    %v308 = vunpack.c.l.b16 %v276
    %v309 = vunpack.c.l.b16 %v277
    %v310 = vunpack.c.l.b16 %v278
    %v311 = vunpack.c.l.b16 %v279
    %v312 = vunpack.c.l.b16 %v280
    %v313 = vunpack.c.l.b16 %v281
    %v314 = vunpack.c.l.b16 %v282
    %v315 = vunpack.c.l.b16 %v283
    %v316 = vunpack.c.l.b16 %v284
    %v317 = vunpack.c.l.b16 %v285
    %v318 = vunpack.c.l.b16 %v286
    %v319 = vunpack.c.l.b16 %v287
    %v320 = vunpack.c.l.b16 %v288
    %v321 = vunpack.c.l.b16 %v289
    %v322 = vunpack.c.l.b16 %v290
    %v323 = vunpack.c.l.b16 %v291
    %v324 = vpack.c.b16 %v309, %v308
    %v325 = vpack.c.b16 %v311, %v310
    %v326 = vpack.c.b16 %v313, %v312
    %v327 = vpack.c.b16 %v315, %v314
    %v328 = vpack.c.b16 %v317, %v316
    %v329 = vpack.c.b16 %v319, %v318
    %v330 = vpack.c.b16 %v321, %v320
    %v331 = vpack.c.b16 %v323, %v322
    %340 = vmatpush.bf16.msra.mxu0 %v331
    %341 = vmatpush.bf16.msra.mxu0 %v330
    %342 = vmatpush.bf16.msra.mxu0 %v329
    %343 = vmatpush.bf16.msra.mxu0 %v328
    %344 = vmatpush.bf16.msra.mxu0 %v327
    %345 = vmatpush.bf16.msra.mxu0 %v326
    %346 = vmatpush.bf16.msra.mxu0 %v325
    %347 = vmatpush.bf16.msra.mxu0 %v324
    %348 = vmatmul.bf16.gmra.mxu0 %v275
    %v349 = vpop.f32.mrf.mxu0
    %v350 = vadd.f32 0.0, %v349
    %v351 = vpop.f32.mrf.mxu0
    %352 = vdwg.mxu0
    %353 = vst [vmem:[#allocation11] sm:$0xff] %v350
    // Predicated region
    $region46: #{tpu_custom_call.1} parent=1 // pred_check
      _
    $region47: #{tpu_custom_call.1} parent=1 // pred_check_branch
      %355 = sbr.rel (0) target = $region49
    $region48: #{tpu_custom_call.1} parent=1 // pred_region
      %357 = vsyncadd [#allocation4], 0
      %s359 = sshll.u32 [#allocation11], 4
      %s360 = int_to_ptr.vmem [resolvable:$true] %s359
      %s361 = sshll.u32 %s6, 4
      %s362 = int_to_ptr.hbm [resolvable:$true] %s361
      %364 = dma.vmem_to_hbm [thread:$0]  %s360, 128, %s362, [#allocation4]
    $region49: #{tpu_custom_call.1} parent=1 // pred_fallthru
      _
    // Predicated region
    $region50: #{tpu_custom_call.1} parent=1 // pred_check
      _
    $region51: #{tpu_custom_call.1} parent=1 // pred_check_branch
      %366 = sbr.rel (0) target = $region53
    $region52: #{tpu_custom_call.1} parent=1 // pred_region
      %368 = dma.done [#allocation4], 128
    $region53: #{tpu_custom_call.1} parent=1 // pred_fallthru
      _
    %369 = vsyncpa [#allocation3], 1
    %370 = vsyncpa [#allocation6], 1
    %371 = vsyncpa [#allocation9], 1
    %372 = vsyncpa [#allocation4], 1

</llo_original>
